<compile_context>
chip_gen: v6e
topology: v6e:2x2x1
jax: 0.10.0
libtpu: 0.0.40
codegen_flags: <defaults>
</compile_context>

<pallas_src>
import functools
import math

import jax
import jax.numpy as jnp
from jax.experimental import pallas as pl
from jax.experimental.pallas import tpu as pltpu

LANE = 128          # feature dims padded to multiples of the TPU lane width
SUBLANE_BF16 = 16   # bf16 packs 16 rows per vreg sublane group
TM_MAX = 512        # amortizes ~0.35 us/step grid overhead, keeps MXU fed


def _round_up(n, m):
    return ((n + m - 1) // m) * m


def fc_block_kernel(x_ref,
                    w1_ref, b1_ref, w2_ref, b2_ref, w3_ref, b3_ref,
                    w4_ref, b4_ref, w5_ref, b5_ref,
                    o_ref):
    # x_ref : (TM, K1) bf16 row-tile of the (padded) input
    # w*_ref: (K, N)   bf16 padded weights (lane-dense, resident in VMEM)
    # b*_ref: (1, N)   f32  padded biases
    # o_ref : (TM, N5) f32  row-tile of the (padded) output
    h = x_ref[...]                                     # bf16
    acc = None
    for w_ref, b_ref in ((w1_ref, b1_ref), (w2_ref, b2_ref), (w3_ref, b3_ref),
                         (w4_ref, b4_ref), (w5_ref, b5_ref)):
        acc = jnp.dot(h, w_ref[...],                   # MXU, bf16 x bf16
                      preferred_element_type=jnp.float32)
        acc = acc + b_ref[...]                         # f32 epilogue (bias)
        h = acc.astype(jnp.bfloat16)                   # bf16 operand for next matmul
    o_ref[...] = acc.astype(o_ref.dtype)               # f32, lane-dense store


def pad_params(params):
    """ONE-TIME prep (call outside the per-step path!).

    Pads every layer's weight/bias to lane multiples, casts weights to bf16
    and biases to f32.  Returns (flat padded arrays, true dims, padded dims).
    """
    dims = (params["w1"].shape[0],) + tuple(
        params[f"w{i}"].shape[1] for i in range(1, 6))
    dims_p = tuple(_round_up(d, LANE) for d in dims)
    flat = []
    for layer in range(1, 6):
        w = jnp.asarray(params[f"w{layer}"])
        b = jnp.asarray(params[f"b{layer}"])
        k, n = w.shape
        kp, np_ = dims_p[layer - 1], dims_p[layer]
        w_p = jnp.zeros((kp, np_), jnp.bfloat16).at[:k, :n].set(
            w.astype(jnp.bfloat16))
        b_p = jnp.zeros((1, np_), jnp.float32).at[:, :n].set(
            b.astype(jnp.float32))
        flat += [w_p, b_p]
    return tuple(flat), dims, dims_p


def _vmem_budget_bytes():
    """Generation-aware VMEM budget (~75% of physical; v7x-safe fallback)."""
    try:
        phys = int(pltpu.get_tpu_info().vmem_capacity_bytes)
    except Exception:                       # no query available -> assume v7x
        phys = 64 * 1024 * 1024
    return (phys * 3) // 4                  # 48 MiB on v7x, 96 MiB on v5e/v6e


@functools.partial(jax.jit, static_argnames=("dims", "dims_p"))
def fc_block(x, padded, dims, dims_p):
    """x: (B, in_features) f32.  padded/dims/dims_p: from pad_params()."""
    B, f_in = x.shape
    assert f_in == dims[0]

    # ---- VMEM plan: all 5 padded bf16 weights stay resident, single-buffered.
    budget = _vmem_budget_bytes()
    w_bytes = sum(dims_p[i] * dims_p[i + 1] * 2 for i in range(5))     # bf16
    b_bytes = sum(8 * dims_p[i + 1] * 4 for i in range(5))             # f32, sublane-padded
    fixed = w_bytes + b_bytes
    if fixed > budget:
        # TODO(synk): K-tile the largest layers (w1/w5) over an 'arbitrary'
        # reduction grid axis instead of keeping all weights resident.
        raise NotImplementedError(
            f"resident padded weights ({fixed} B) exceed VMEM budget ({budget} B)")

    # Per-row bytes for the double-buffered x tile (bf16) and out tile (f32).
    per_row = 2 * (dims_p[0] * 2) + 2 * (dims_p[5] * 4)
    avail = budget - fixed - (4 << 20)          # margin for compiler scratch
    tm_vmem_cap = max(SUBLANE_BF16,
                      (avail // max(per_row, 1)) // SUBLANE_BF16 * SUBLANE_BF16)

    # ---- Row tiling: multiple of 16 (bf16 packing); >=2 grid steps when the
    # batch permits so v7x's two TensorCores both get work and I/O pipelines.
    rows16 = _round_up(B, SUBLANE_BF16)
    tm = min(TM_MAX,
             _round_up(max(rows16 // 2, SUBLANE_BF16), SUBLANE_BF16),
             tm_vmem_cap)
    rows_p = _round_up(rows16, tm)

    # Zero-pad input rows/cols; cast activations to bf16 for the MXU.
    x_p = jnp.zeros((rows_p, dims_p[0]), jnp.bfloat16).at[:B, :f_in].set(
        x.astype(jnp.bfloat16))

    # ---- BlockSpecs: x/out row-tiled (double-buffered by default); weights &
    # biases use a constant index_map and are single-buffered (Buffered(1)) so
    # the second copy of never-changing blocks does not waste VMEM.
    in_specs = [pl.BlockSpec((tm, dims_p[0]), lambda i: (i, 0))]
    for layer in range(1, 6):
        in_specs += [
            pl.BlockSpec((dims_p[layer - 1], dims_p[layer]), lambda i: (0, 0),
                         pipeline_mode=pl.Buffered(1)),
            pl.BlockSpec((1, dims_p[layer]), lambda i: (0, 0),
                         pipeline_mode=pl.Buffered(1)),
        ]

    flops = 2 * rows_p * sum(dims_p[i] * dims_p[i + 1] for i in range(5))
    bytes_accessed = (rows_p * dims_p[0] * 2      # x (bf16)
                      + rows_p * dims_p[5] * 4    # out (f32)
                      + w_bytes + b_bytes)        # weights + biases
    cost = pl.CostEstimate(flops=flops, transcendentals=0,
                           bytes_accessed=bytes_accessed)

    out_p = pl.pallas_call(
        fc_block_kernel,
        out_shape=jax.ShapeDtypeStruct((rows_p, dims_p[5]), jnp.float32),
        grid=(rows_p // tm,),
        in_specs=in_specs,
        out_specs=pl.BlockSpec((tm, dims_p[5]), lambda i: (i, 0)),
        compiler_params=pltpu.CompilerParams(
            dimension_semantics=("parallel",),   # shard rows across v7x TCs
            vmem_limit_bytes=budget,             # generation-aware limit
        ),
        cost_estimate=cost,
    )(x_p, *padded)

    # Slice away row/lane padding (exact: padded weights/biases/rows are zero).
    return out_p[:B, :dims[5]]


def init_params(key, in_features, out_features):
    """nn.Linear-style init; weights stored as (in, out) (already transposed)."""
    d14 = math.ceil(out_features / 4)
    d12 = math.ceil(out_features / 2)
    dims = [in_features, d14, d12, d14, d12, out_features]
    keys = jax.random.split(key, 10)
    params = {}
    for i in range(5):
        fan_in, fan_out = dims[i], dims[i + 1]
        bound = 1.0 / math.sqrt(fan_in)
        params[f"w{i + 1}"] = jax.random.uniform(
            keys[2 * i], (fan_in, fan_out), jnp.float32, -bound, bound)
        params[f"b{i + 1}"] = jax.random.uniform(
            keys[2 * i + 1], (fan_out,), jnp.float32, -bound, bound)
    return params


def fc_block_ref(x, params):
    """Pure-JAX f32 reference (matches the PyTorch forward)."""
    h = x
    for i in range(1, 6):
        h = h @ params[f"w{i}"] + params[f"b{i}"]
    return h


if __name__ == "__main__":
    key = jax.random.PRNGKey(0)
    kx, kp = jax.random.split(key)

    # Small shapes consistent with the module: batch=8, in=16, out=32.
    B, in_features, out_features = 8, 16, 32
    x = jax.random.normal(kx, (B, in_features), jnp.float32)
    params = init_params(kp, in_features, out_features)

    # One-time weight prep (padding + bf16 cast hoisted out of the call path).
    padded, dims, dims_p = pad_params(params)
    padded = jax.block_until_ready(padded)

    out = fc_block(x, padded, dims, dims_p)
    jax.block_until_ready(out)
    assert out.shape == (B, out_features)

    # Correctness vs f32 reference (loose tolerance: bf16 MXU operands,
    # error compounds across the 5 chained layers).
    ref = fc_block_ref(x, params)
    assert jnp.allclose(out, ref, atol=1e-1, rtol=1e-1), (
        float(jnp.max(jnp.abs(out - ref))))

    print("KERNEL_OK")
</pallas_src>

<mosaic_0001>
module attributes {stable_mosaic.version = 11 : i64} {
  func.func @fc_block_kernel(%arg0: i32, %arg1: memref<16x128xbf16, #tpu.memory_space<vmem>>, %arg2: memref<128x128xbf16, #tpu.memory_space<vmem>>, %arg3: memref<1x128xf32, #tpu.memory_space<vmem>>, %arg4: memref<128x128xbf16, #tpu.memory_space<vmem>>, %arg5: memref<1x128xf32, #tpu.memory_space<vmem>>, %arg6: memref<128x128xbf16, #tpu.memory_space<vmem>>, %arg7: memref<1x128xf32, #tpu.memory_space<vmem>>, %arg8: memref<128x128xbf16, #tpu.memory_space<vmem>>, %arg9: memref<1x128xf32, #tpu.memory_space<vmem>>, %arg10: memref<128x128xbf16, #tpu.memory_space<vmem>>, %arg11: memref<1x128xf32, #tpu.memory_space<vmem>>, %arg12: memref<16x128xf32, #tpu.memory_space<vmem>>) attributes {dimension_semantics = [#tpu.dimension_semantics<parallel>], iteration_bounds = array<i64: 1>, scalar_prefetch = 0 : i64, scratch_operands = 0 : i64, tpu.core_type = #tpu.core_type<tc>, window_params = [{transform_indices = @transform_0, window_bounds = array<i64: 16, 128>}, {pipeline_mode = #tpu.pipeline_mode<synchronous>, transform_indices = @transform_1, window_bounds = array<i64: 128, 128>}, {pipeline_mode = #tpu.pipeline_mode<synchronous>, transform_indices = @transform_2, window_bounds = array<i64: 1, 128>}, {pipeline_mode = #tpu.pipeline_mode<synchronous>, transform_indices = @transform_3, window_bounds = array<i64: 128, 128>}, {pipeline_mode = #tpu.pipeline_mode<synchronous>, transform_indices = @transform_4, window_bounds = array<i64: 1, 128>}, {pipeline_mode = #tpu.pipeline_mode<synchronous>, transform_indices = @transform_5, window_bounds = array<i64: 128, 128>}, {pipeline_mode = #tpu.pipeline_mode<synchronous>, transform_indices = @transform_6, window_bounds = array<i64: 1, 128>}, {pipeline_mode = #tpu.pipeline_mode<synchronous>, transform_indices = @transform_7, window_bounds = array<i64: 128, 128>}, {pipeline_mode = #tpu.pipeline_mode<synchronous>, transform_indices = @transform_8, window_bounds = array<i64: 1, 128>}, {pipeline_mode = #tpu.pipeline_mode<synchronous>, transform_indices = @transform_9, window_bounds = array<i64: 128, 128>}, {pipeline_mode = #tpu.pipeline_mode<synchronous>, transform_indices = @transform_10, window_bounds = array<i64: 1, 128>}, {transform_indices = @transform_11, window_bounds = array<i64: 16, 128>}]} {
    %c0 = arith.constant 0 : index
    %c0_0 = arith.constant 0 : index
    %0 = vector.load %arg1[%c0, %c0_0] : memref<16x128xbf16, #tpu.memory_space<vmem>>, vector<16x128xbf16>
    %c0_1 = arith.constant 0 : index
    %c0_2 = arith.constant 0 : index
    %1 = vector.load %arg2[%c0_1, %c0_2] : memref<128x128xbf16, #tpu.memory_space<vmem>>, vector<128x128xbf16>
    %cst = arith.constant dense<0.000000e+00> : vector<16x128xf32>
    %2 = tpu.matmul %0, %1, %cst {dimension_numbers = #tpu.dot_dimension_numbers<[1], [0], [0], [1], [0, 0, 1, 1], [], []>} : vector<16x128xbf16>, vector<128x128xbf16>, vector<16x128xf32> -> vector<16x128xf32>
    %c0_3 = arith.constant 0 : index
    %c0_4 = arith.constant 0 : index
    %3 = vector.load %arg3[%c0_3, %c0_4] : memref<1x128xf32, #tpu.memory_space<vmem>>, vector<1x128xf32>
    %4 = vector.broadcast %3 : vector<1x128xf32> to vector<16x128xf32>
    %5 = arith.addf %2, %4 : vector<16x128xf32>
    %6 = arith.truncf %5 : vector<16x128xf32> to vector<16x128xbf16>
    %c0_5 = arith.constant 0 : index
    %c0_6 = arith.constant 0 : index
    %7 = vector.load %arg4[%c0_5, %c0_6] : memref<128x128xbf16, #tpu.memory_space<vmem>>, vector<128x128xbf16>
    %cst_7 = arith.constant dense<0.000000e+00> : vector<16x128xf32>
    %8 = tpu.matmul %6, %7, %cst_7 {dimension_numbers = #tpu.dot_dimension_numbers<[1], [0], [0], [1], [0, 0, 1, 1], [], []>} : vector<16x128xbf16>, vector<128x128xbf16>, vector<16x128xf32> -> vector<16x128xf32>
    %c0_8 = arith.constant 0 : index
    %c0_9 = arith.constant 0 : index
    %9 = vector.load %arg5[%c0_8, %c0_9] : memref<1x128xf32, #tpu.memory_space<vmem>>, vector<1x128xf32>
    %10 = vector.broadcast %9 : vector<1x128xf32> to vector<16x128xf32>
    %11 = arith.addf %8, %10 : vector<16x128xf32>
    %12 = arith.truncf %11 : vector<16x128xf32> to vector<16x128xbf16>
    %c0_10 = arith.constant 0 : index
    %c0_11 = arith.constant 0 : index
    %13 = vector.load %arg6[%c0_10, %c0_11] : memref<128x128xbf16, #tpu.memory_space<vmem>>, vector<128x128xbf16>
    %cst_12 = arith.constant dense<0.000000e+00> : vector<16x128xf32>
    %14 = tpu.matmul %12, %13, %cst_12 {dimension_numbers = #tpu.dot_dimension_numbers<[1], [0], [0], [1], [0, 0, 1, 1], [], []>} : vector<16x128xbf16>, vector<128x128xbf16>, vector<16x128xf32> -> vector<16x128xf32>
    %c0_13 = arith.constant 0 : index
    %c0_14 = arith.constant 0 : index
    %15 = vector.load %arg7[%c0_13, %c0_14] : memref<1x128xf32, #tpu.memory_space<vmem>>, vector<1x128xf32>
    %16 = vector.broadcast %15 : vector<1x128xf32> to vector<16x128xf32>
    %17 = arith.addf %14, %16 : vector<16x128xf32>
    %18 = arith.truncf %17 : vector<16x128xf32> to vector<16x128xbf16>
    %c0_15 = arith.constant 0 : index
    %c0_16 = arith.constant 0 : index
    %19 = vector.load %arg8[%c0_15, %c0_16] : memref<128x128xbf16, #tpu.memory_space<vmem>>, vector<128x128xbf16>
    %cst_17 = arith.constant dense<0.000000e+00> : vector<16x128xf32>
    %20 = tpu.matmul %18, %19, %cst_17 {dimension_numbers = #tpu.dot_dimension_numbers<[1], [0], [0], [1], [0, 0, 1, 1], [], []>} : vector<16x128xbf16>, vector<128x128xbf16>, vector<16x128xf32> -> vector<16x128xf32>
    %c0_18 = arith.constant 0 : index
    %c0_19 = arith.constant 0 : index
    %21 = vector.load %arg9[%c0_18, %c0_19] : memref<1x128xf32, #tpu.memory_space<vmem>>, vector<1x128xf32>
    %22 = vector.broadcast %21 : vector<1x128xf32> to vector<16x128xf32>
    %23 = arith.addf %20, %22 : vector<16x128xf32>
    %24 = arith.truncf %23 : vector<16x128xf32> to vector<16x128xbf16>
    %c0_20 = arith.constant 0 : index
    %c0_21 = arith.constant 0 : index
    %25 = vector.load %arg10[%c0_20, %c0_21] : memref<128x128xbf16, #tpu.memory_space<vmem>>, vector<128x128xbf16>
    %cst_22 = arith.constant dense<0.000000e+00> : vector<16x128xf32>
    %26 = tpu.matmul %24, %25, %cst_22 {dimension_numbers = #tpu.dot_dimension_numbers<[1], [0], [0], [1], [0, 0, 1, 1], [], []>} : vector<16x128xbf16>, vector<128x128xbf16>, vector<16x128xf32> -> vector<16x128xf32>
    %c0_23 = arith.constant 0 : index
    %c0_24 = arith.constant 0 : index
    %27 = vector.load %arg11[%c0_23, %c0_24] : memref<1x128xf32, #tpu.memory_space<vmem>>, vector<1x128xf32>
    %28 = vector.broadcast %27 : vector<1x128xf32> to vector<16x128xf32>
    %29 = arith.addf %26, %28 : vector<16x128xf32>
    %c0_25 = arith.constant 0 : index
    %c0_26 = arith.constant 0 : index
    %30 = vector.load %arg12[%c0_25, %c0_26] : memref<16x128xf32, #tpu.memory_space<vmem>>, vector<16x128xf32>
    tpu.vector_store %arg12[%c0_25, %c0_26], %29 {strides = array<i32>} : memref<16x128xf32, #tpu.memory_space<vmem>>, vector<16x128xf32>,
    return
  }
  func.func @transform_0(%arg0: i32) -> (i32, i32) {
    %c0_i32 = arith.constant 0 : i32
    %c0_i32_0 = arith.constant 0 : i32
    return %arg0, %c0_i32 : i32, i32
  }
  func.func @transform_1(%arg0: i32) -> (i32, i32) {
    %c0_i32 = arith.constant 0 : i32
    %c0_i32_0 = arith.constant 0 : i32
    %c0_i32_1 = arith.constant 0 : i32
    return %c0_i32, %c0_i32_0 : i32, i32
  }
  func.func @transform_2(%arg0: i32) -> (i32, i32) {
    %c0_i32 = arith.constant 0 : i32
    %c0_i32_0 = arith.constant 0 : i32
    %c0_i32_1 = arith.constant 0 : i32
    return %c0_i32, %c0_i32_0 : i32, i32
  }
  func.func @transform_3(%arg0: i32) -> (i32, i32) {
    %c0_i32 = arith.constant 0 : i32
    %c0_i32_0 = arith.constant 0 : i32
    %c0_i32_1 = arith.constant 0 : i32
    return %c0_i32, %c0_i32_0 : i32, i32
  }
  func.func @transform_4(%arg0: i32) -> (i32, i32) {
    %c0_i32 = arith.constant 0 : i32
    %c0_i32_0 = arith.constant 0 : i32
    %c0_i32_1 = arith.constant 0 : i32
    return %c0_i32, %c0_i32_0 : i32, i32
  }
  func.func @transform_5(%arg0: i32) -> (i32, i32) {
    %c0_i32 = arith.constant 0 : i32
    %c0_i32_0 = arith.constant 0 : i32
    %c0_i32_1 = arith.constant 0 : i32
    return %c0_i32, %c0_i32_0 : i32, i32
  }
  func.func @transform_6(%arg0: i32) -> (i32, i32) {
    %c0_i32 = arith.constant 0 : i32
    %c0_i32_0 = arith.constant 0 : i32
    %c0_i32_1 = arith.constant 0 : i32
    return %c0_i32, %c0_i32_0 : i32, i32
  }
  func.func @transform_7(%arg0: i32) -> (i32, i32) {
    %c0_i32 = arith.constant 0 : i32
    %c0_i32_0 = arith.constant 0 : i32
    %c0_i32_1 = arith.constant 0 : i32
    return %c0_i32, %c0_i32_0 : i32, i32
  }
  func.func @transform_8(%arg0: i32) -> (i32, i32) {
    %c0_i32 = arith.constant 0 : i32
    %c0_i32_0 = arith.constant 0 : i32
    %c0_i32_1 = arith.constant 0 : i32
    return %c0_i32, %c0_i32_0 : i32, i32
  }
  func.func @transform_9(%arg0: i32) -> (i32, i32) {
    %c0_i32 = arith.constant 0 : i32
    %c0_i32_0 = arith.constant 0 : i32
    %c0_i32_1 = arith.constant 0 : i32
    return %c0_i32, %c0_i32_0 : i32, i32
  }
  func.func @transform_10(%arg0: i32) -> (i32, i32) {
    %c0_i32 = arith.constant 0 : i32
    %c0_i32_0 = arith.constant 0 : i32
    %c0_i32_1 = arith.constant 0 : i32
    return %c0_i32, %c0_i32_0 : i32, i32
  }
  func.func @transform_11(%arg0: i32) -> (i32, i32) {
    %c0_i32 = arith.constant 0 : i32
    %c0_i32_0 = arith.constant 0 : i32
    return %arg0, %c0_i32 : i32, i32
  }
}

</mosaic_0001>

<llo_original>
// kernel: fc_block.1
$region0: #{fc_block.1}
  #allocation0 [shape = 'u32[]', space=smem, size = 0x4, offset = 0x4, fixed_abs, tag = 'smem constant byte address 0x4 - core index']
  #allocation1 [shape = 'u32[144,128]{1,0:T(1,128)}', space=vmem, size = 0x12000, scoped, tag = 'internal scratch']
  %s0 = inlined_call_operand.vmem [shape: bf16[16,128], index: 0, kind: input, shape index: {}]
  %s1 = inlined_call_operand.hbm [shape: bf16[128,128], index: 1, kind: input, shape index: {}]
  %s2 = inlined_call_operand.vmem [shape: f32[1,128], index: 2, kind: input, shape index: {}]
  %s3 = inlined_call_operand.hbm [shape: bf16[128,128], index: 3, kind: input, shape index: {}]
  %s4 = inlined_call_operand.vmem [shape: f32[1,128], index: 4, kind: input, shape index: {}]
  %s5 = inlined_call_operand.hbm [shape: bf16[128,128], index: 5, kind: input, shape index: {}]
  %s6 = inlined_call_operand.vmem [shape: f32[1,128], index: 6, kind: input, shape index: {}]
  %s7 = inlined_call_operand.hbm [shape: bf16[128,128], index: 7, kind: input, shape index: {}]
  %s8 = inlined_call_operand.vmem [shape: f32[1,128], index: 8, kind: input, shape index: {}]
  %s9 = inlined_call_operand.hbm [shape: bf16[128,128], index: 9, kind: input, shape index: {}]
  %s10 = inlined_call_operand.vmem [shape: f32[1,128], index: 10, kind: input, shape index: {}]
  %s11 = inlined_call_operand.vmem [shape: f32[16,128], index: 11, kind: output, shape index: {}]
  %s12 = sld [smem:[#allocation0]]
  $region74: #{fc_block.1} parent=0
    _
  %s14 = ssub.s32 1, %s12
  %s15 = scalar_select 0, %s14, %s12
  $region1: #{fc_block.1} parent=0
    #allocation2 [shape = 'u8[32768]{0}', space=vmem, size = 0x8000, scoped, tag = 'input window, operand 1, single buffered']
    #allocation3 [shape = 's32[1]{0}', space=sflag, size = 0x4, scoped, tag = 'scoped memory for fc_block.1']
    #allocation4 [shape = 'u8[32768]{0}', space=vmem, size = 0x8000, scoped, tag = 'input window, operand 3, single buffered']
    #allocation5 [shape = 's32[1]{0}', space=sflag, size = 0x4, scoped, tag = 'scoped memory for fc_block.1']
    #allocation6 [shape = 'u8[32768]{0}', space=vmem, size = 0x8000, scoped, tag = 'input window, operand 5, single buffered']
    #allocation7 [shape = 'u8[32768]{0}', space=vmem, size = 0x8000, scoped, tag = 'input window, operand 7, single buffered']
    #allocation8 [shape = 's32[1]{0}', space=sflag, size = 0x4, scoped, tag = 'scoped memory for fc_block.1']
    #allocation9 [shape = 'u8[32768]{0}', space=vmem, size = 0x8000, scoped, tag = 'input window, operand 9, single buffered']
    %16 = vsyncpa [#allocation3], 0
    %17 = vsyncpa [#allocation5], 0
    %18 = vsyncpa [#allocation8], 0
    // Predicated region
    $region2: #{fc_block.1} parent=1 // pred_check
      _
    $region3: #{fc_block.1} parent=1 // pred_check_branch
      %20 = sbr.rel (0) target = $region5
    $region4: #{fc_block.1} parent=1 // pred_region
      _
    $region5: #{fc_block.1} parent=1 // pred_fallthru
      _
    // Predicated region
    $region6: #{fc_block.1} parent=1 // pred_check
      _
    $region7: #{fc_block.1} parent=1 // pred_check_branch
      %22 = sbr.rel (0) target = $region9
    $region8: #{fc_block.1} parent=1 // pred_region
      %s24 = ssub.s32 1024, 1024
      %25 = vsyncadd [#allocation3], %s24
      %s26 = sshll.u32 [#allocation2], 4
      %s27 = int_to_ptr.vmem [resolvable:$true] %s26
      %32 = dma.hbm_to_vmem [thread:$0]  %s1, 1024, %s27, [#allocation3], 64, 64, 4
    $region9: #{fc_block.1} parent=1 // pred_fallthru
      _
    // Predicated region
    $region10: #{fc_block.1} parent=1 // pred_check
      _
    $region11: #{fc_block.1} parent=1 // pred_check_branch
      %34 = sbr.rel (0) target = $region13
    $region12: #{fc_block.1} parent=1 // pred_region
      _
    $region13: #{fc_block.1} parent=1 // pred_fallthru
      _
    // Predicated region
    $region14: #{fc_block.1} parent=1 // pred_check
      _
    $region15: #{fc_block.1} parent=1 // pred_check_branch
      %36 = sbr.rel (0) target = $region17
    $region16: #{fc_block.1} parent=1 // pred_region
      %s38 = ssub.s32 1024, 1024
      %39 = vsyncadd [#allocation5], %s38
      %s40 = sshll.u32 [#allocation4], 4
      %s41 = int_to_ptr.vmem [resolvable:$true] %s40
      %46 = dma.hbm_to_vmem [thread:$0]  %s3, 1024, %s41, [#allocation5], 64, 64, 4
    $region17: #{fc_block.1} parent=1 // pred_fallthru
      _
    // Predicated region
    $region18: #{fc_block.1} parent=1 // pred_check
      _
    $region19: #{fc_block.1} parent=1 // pred_check_branch
      %48 = sbr.rel (0) target = $region21
    $region20: #{fc_block.1} parent=1 // pred_region
      _
    $region21: #{fc_block.1} parent=1 // pred_fallthru
      _
    // Predicated region
    $region22: #{fc_block.1} parent=1 // pred_check
      _
    $region23: #{fc_block.1} parent=1 // pred_check_branch
      %50 = sbr.rel (0) target = $region25
    $region24: #{fc_block.1} parent=1 // pred_region
      %s52 = ssub.s32 1024, 1024
      %53 = vsyncadd [#allocation5], %s52
      %s54 = sshll.u32 [#allocation6], 4
      %s55 = int_to_ptr.vmem [resolvable:$true] %s54
      %60 = dma.hbm_to_vmem [thread:$0]  %s5, 1024, %s55, [#allocation5], 64, 64, 4
    $region25: #{fc_block.1} parent=1 // pred_fallthru
      _
    // Predicated region
    $region26: #{fc_block.1} parent=1 // pred_check
      _
    $region27: #{fc_block.1} parent=1 // pred_check_branch
      %62 = sbr.rel (0) target = $region29
    $region28: #{fc_block.1} parent=1 // pred_region
      _
    $region29: #{fc_block.1} parent=1 // pred_fallthru
      _
    // Predicated region
    $region30: #{fc_block.1} parent=1 // pred_check
      _
    $region31: #{fc_block.1} parent=1 // pred_check_branch
      %64 = sbr.rel (0) target = $region33
    $region32: #{fc_block.1} parent=1 // pred_region
      %s66 = ssub.s32 1024, 1024
      %67 = vsyncadd [#allocation8], %s66
      %s68 = sshll.u32 [#allocation7], 4
      %s69 = int_to_ptr.vmem [resolvable:$true] %s68
      %74 = dma.hbm_to_vmem [thread:$0]  %s7, 1024, %s69, [#allocation8], 64, 64, 4
    $region33: #{fc_block.1} parent=1 // pred_fallthru
      _
    // Predicated region
    $region34: #{fc_block.1} parent=1 // pred_check
      _
    $region35: #{fc_block.1} parent=1 // pred_check_branch
      %76 = sbr.rel (0) target = $region37
    $region36: #{fc_block.1} parent=1 // pred_region
      _
    $region37: #{fc_block.1} parent=1 // pred_fallthru
      _
    // Predicated region
    $region38: #{fc_block.1} parent=1 // pred_check
      _
    $region39: #{fc_block.1} parent=1 // pred_check_branch
      %78 = sbr.rel (0) target = $region41
    $region40: #{fc_block.1} parent=1 // pred_region
      %s80 = ssub.s32 1024, 1024
      %81 = vsyncadd [#allocation8], %s80
      %s82 = sshll.u32 [#allocation9], 4
      %s83 = int_to_ptr.vmem [resolvable:$true] %s82
      %88 = dma.hbm_to_vmem [thread:$0]  %s9, 1024, %s83, [#allocation8], 64, 64, 4
    $region41: #{fc_block.1} parent=1 // pred_fallthru
      _
    // Predicated region
    $region42: #{fc_block.1} parent=1 // pred_check
      _
    $region43: #{fc_block.1} parent=1 // pred_check_branch
      %90 = sbr.rel (0) target = $region45
    $region44: #{fc_block.1} parent=1 // pred_region
      _
    $region45: #{fc_block.1} parent=1 // pred_fallthru
      _
    // Predicated region
    $region46: #{fc_block.1} parent=1 // pred_check
      _
    $region47: #{fc_block.1} parent=1 // pred_check_branch
      %92 = sbr.rel (0) target = $region49
    $region48: #{fc_block.1} parent=1 // pred_region
      %93 = dma.done [#allocation3], 1024
    $region49: #{fc_block.1} parent=1 // pred_fallthru
      _
    // Predicated region
    $region50: #{fc_block.1} parent=1 // pred_check
      _
    $region51: #{fc_block.1} parent=1 // pred_check_branch
      %95 = sbr.rel (0) target = $region53
    $region52: #{fc_block.1} parent=1 // pred_region
      %96 = dma.done [#allocation5], 1024
    $region53: #{fc_block.1} parent=1 // pred_fallthru
      _
    // Predicated region
    $region54: #{fc_block.1} parent=1 // pred_check
      _
    $region55: #{fc_block.1} parent=1 // pred_check_branch
      %98 = sbr.rel (0) target = $region57
    $region56: #{fc_block.1} parent=1 // pred_region
      %99 = dma.done [#allocation5], 1024
    $region57: #{fc_block.1} parent=1 // pred_fallthru
      _
    // Predicated region
    $region58: #{fc_block.1} parent=1 // pred_check
      _
    $region59: #{fc_block.1} parent=1 // pred_check_branch
      %101 = sbr.rel (0) target = $region61
    $region60: #{fc_block.1} parent=1 // pred_region
      %102 = dma.done [#allocation8], 1024
    $region61: #{fc_block.1} parent=1 // pred_fallthru
      _
    // Predicated region
    $region62: #{fc_block.1} parent=1 // pred_check
      _
    $region63: #{fc_block.1} parent=1 // pred_check_branch
      %104 = sbr.rel (0) target = $region65
    $region64: #{fc_block.1} parent=1 // pred_region
      %105 = dma.done [#allocation8], 1024
    $region65: #{fc_block.1} parent=1 // pred_fallthru
      _
    %v107 = vld [vmem:[%s0] sm:$0xf]
    %v108 = vld [vmem:[%s0 + $0x4] sm:$0xf]
    %v109 = vld [vmem:[#allocation2] sm:$0xf]
    %v110 = vld [vmem:[#allocation2 + $0x4] sm:$0xf]
    %v111 = vld [vmem:[#allocation2 + $0x8] sm:$0xf]
    %v112 = vld [vmem:[#allocation2 + $0xc] sm:$0xf]
    %v113 = vld [vmem:[#allocation2 + $0x10] sm:$0xf]
    %v114 = vld [vmem:[#allocation2 + $0x14] sm:$0xf]
    %v115 = vld [vmem:[#allocation2 + $0x18] sm:$0xf]
    %v116 = vld [vmem:[#allocation2 + $0x1c] sm:$0xf]
    %v117 = vld [vmem:[#allocation2 + $0x20] sm:$0xf]
    %v118 = vld [vmem:[#allocation2 + $0x24] sm:$0xf]
    %v119 = vld [vmem:[#allocation2 + $0x28] sm:$0xf]
    %v120 = vld [vmem:[#allocation2 + $0x2c] sm:$0xf]
    %v121 = vld [vmem:[#allocation2 + $0x30] sm:$0xf]
    %v122 = vld [vmem:[#allocation2 + $0x34] sm:$0xf]
    %v123 = vld [vmem:[#allocation2 + $0x38] sm:$0xf]
    %v124 = vld [vmem:[#allocation2 + $0x3c] sm:$0xf]
    %v125 = vld [vmem:[%s2] sm:$0x1]
    %v127 = vlaneseq
    %v128 = vshrl.u32 %v127, 7
    %v129 = vsub.s32 0, %v128
    %v130 = vrot.slane %v125, %v129
    %v134 = vunpack.c.l.b16 %v107
    %v135 = vunpack.c.l.b16 %v108
    %v136 = vpack.c.b16 %v135, %v134
    %v154 = vunpack.c.l.b16 %v109
    %v155 = vunpack.c.l.b16 %v110
    %v156 = vunpack.c.l.b16 %v111
    %v157 = vunpack.c.l.b16 %v112
    %v158 = vunpack.c.l.b16 %v113
    %v159 = vunpack.c.l.b16 %v114
    %v160 = vunpack.c.l.b16 %v115
    %v161 = vunpack.c.l.b16 %v116
    %v162 = vunpack.c.l.b16 %v117
    %v163 = vunpack.c.l.b16 %v118
    %v164 = vunpack.c.l.b16 %v119
    %v165 = vunpack.c.l.b16 %v120
    %v166 = vunpack.c.l.b16 %v121
    %v167 = vunpack.c.l.b16 %v122
    %v168 = vunpack.c.l.b16 %v123
    %v169 = vunpack.c.l.b16 %v124
    %v170 = vpack.c.b16 %v155, %v154
    %v171 = vpack.c.b16 %v157, %v156
    %v172 = vpack.c.b16 %v159, %v158
    %v173 = vpack.c.b16 %v161, %v160
    %v174 = vpack.c.b16 %v163, %v162
    %v175 = vpack.c.b16 %v165, %v164
    %v176 = vpack.c.b16 %v167, %v166
    %v177 = vpack.c.b16 %v169, %v168
    %186 = vmatprep.subr.bf16.mxu0 0
    %187 = vmatpush1.bf16.msra.mxu0 %v177
    %188 = vmatprep.subr.bf16.mxu0 0
    %189 = vmatpush1.bf16.msra.mxu0 %v176
    %190 = vmatprep.subr.bf16.mxu0 0
    %191 = vmatpush1.bf16.msra.mxu0 %v175
    %192 = vmatprep.subr.bf16.mxu0 0
    %193 = vmatpush1.bf16.msra.mxu0 %v174
    %194 = vmatprep.subr.bf16.mxu0 0
    %195 = vmatpush1.bf16.msra.mxu0 %v173
    %196 = vmatprep.subr.bf16.mxu0 0
    %197 = vmatpush1.bf16.msra.mxu0 %v172
    %198 = vmatprep.subr.bf16.mxu0 0
    %199 = vmatpush1.bf16.msra.mxu0 %v171
    %200 = vmatprep.subr.bf16.mxu0 0
    %201 = vmatpush1.bf16.msra.mxu0 %v170
    %202 = vmatprep.subr.bf16.mxu0 0
    %203 = vmatpush2.bf16.msra.mxu0 0
    %204 = vmatprep.subr.bf16.mxu0 0
    %205 = vmatpush2.bf16.msra.mxu0 0
    %206 = vmatprep.subr.bf16.mxu0 0
    %207 = vmatpush2.bf16.msra.mxu0 0
    %208 = vmatprep.subr.bf16.mxu0 0
    %209 = vmatpush2.bf16.msra.mxu0 0
    %210 = vmatprep.subr.bf16.mxu0 0
    %211 = vmatpush2.bf16.msra.mxu0 0
    %212 = vmatprep.subr.bf16.mxu0 0
    %213 = vmatpush2.bf16.msra.mxu0 0
    %214 = vmatprep.subr.bf16.mxu0 0
    %215 = vmatpush2.bf16.msra.mxu0 0
    %216 = vmatprep.subr.bf16.mxu0 0
    %217 = vmatpush2.bf16.msra.mxu0 0
    %218 = vmatprep.mubr.bf16.mxu0 0
    %219 = vmatmul.mubr.bf16.gmra.mxu0 %v136
    %v220 = vpop.f32.mrf.mxu0
    %v221 = vadd.f32 %v130, %v220
    %v222 = vpop.f32.mrf.mxu0
    %v223 = vpop.f32.mrf.mxu0
    %v224 = vadd.f32 %v130, %v223
    %v225 = vpop.f32.mrf.mxu0
    %226 = vdwg.mxu0
    %v227 = vpack.c.bf16 %v224, %v221
    %v228 = vld [vmem:[#allocation4] sm:$0xf]
    %v229 = vld [vmem:[#allocation4 + $0x4] sm:$0xf]
    %v230 = vld [vmem:[#allocation4 + $0x8] sm:$0xf]
    %v231 = vld [vmem:[#allocation4 + $0xc] sm:$0xf]
    %v232 = vld [vmem:[#allocation4 + $0x10] sm:$0xf]
    %v233 = vld [vmem:[#allocation4 + $0x14] sm:$0xf]
    %v234 = vld [vmem:[#allocation4 + $0x18] sm:$0xf]
    %v235 = vld [vmem:[#allocation4 + $0x1c] sm:$0xf]
    %v236 = vld [vmem:[#allocation4 + $0x20] sm:$0xf]
    %v237 = vld [vmem:[#allocation4 + $0x24] sm:$0xf]
    %v238 = vld [vmem:[#allocation4 + $0x28] sm:$0xf]
    %v239 = vld [vmem:[#allocation4 + $0x2c] sm:$0xf]
    %v240 = vld [vmem:[#allocation4 + $0x30] sm:$0xf]
    %v241 = vld [vmem:[#allocation4 + $0x34] sm:$0xf]
    %v242 = vld [vmem:[#allocation4 + $0x38] sm:$0xf]
    %v243 = vld [vmem:[#allocation4 + $0x3c] sm:$0xf]
    %v244 = vld [vmem:[%s4] sm:$0x1]
    %v246 = vlaneseq
    %v247 = vshrl.u32 %v246, 7
    %v248 = vsub.s32 0, %v247
    %v249 = vrot.slane %v244, %v248
    %v267 = vunpack.c.l.b16 %v228
    %v268 = vunpack.c.l.b16 %v229
    %v269 = vunpack.c.l.b16 %v230
    %v270 = vunpack.c.l.b16 %v231
    %v271 = vunpack.c.l.b16 %v232
    %v272 = vunpack.c.l.b16 %v233
    %v273 = vunpack.c.l.b16 %v234
    %v274 = vunpack.c.l.b16 %v235
    %v275 = vunpack.c.l.b16 %v236
    %v276 = vunpack.c.l.b16 %v237
    %v277 = vunpack.c.l.b16 %v238
    %v278 = vunpack.c.l.b16 %v239
    %v279 = vunpack.c.l.b16 %v240
    %v280 = vunpack.c.l.b16 %v241
    %v281 = vunpack.c.l.b16 %v242
    %v282 = vunpack.c.l.b16 %v243
    %v283 = vpack.c.b16 %v268, %v267
    %v284 = vpack.c.b16 %v270, %v269
    %v285 = vpack.c.b16 %v272, %v271
    %v286 = vpack.c.b16 %v274, %v273
    %v287 = vpack.c.b16 %v276, %v275
    %v288 = vpack.c.b16 %v278, %v277
    %v289 = vpack.c.b16 %v280, %v279
    %v290 = vpack.c.b16 %v282, %v281
    %299 = vmatprep.subr.bf16.mxu0 0
    %300 = vmatpush1.bf16.msra.mxu0 %v290
    %301 = vmatprep.subr.bf16.mxu0 0
    %302 = vmatpush1.bf16.msra.mxu0 %v289
    %303 = vmatprep.subr.bf16.mxu0 0
    %304 = vmatpush1.bf16.msra.mxu0 %v288
    %305 = vmatprep.subr.bf16.mxu0 0
    %306 = vmatpush1.bf16.msra.mxu0 %v287
    %307 = vmatprep.subr.bf16.mxu0 0
    %308 = vmatpush1.bf16.msra.mxu0 %v286
    %309 = vmatprep.subr.bf16.mxu0 0
    %310 = vmatpush1.bf16.msra.mxu0 %v285
    %311 = vmatprep.subr.bf16.mxu0 0
    %312 = vmatpush1.bf16.msra.mxu0 %v284
    %313 = vmatprep.subr.bf16.mxu0 0
    %314 = vmatpush1.bf16.msra.mxu0 %v283
    %315 = vmatprep.subr.bf16.mxu0 0
    %316 = vmatpush2.bf16.msra.mxu0 0
    %317 = vmatprep.subr.bf16.mxu0 0
    %318 = vmatpush2.bf16.msra.mxu0 0
    %319 = vmatprep.subr.bf16.mxu0 0
    %320 = vmatpush2.bf16.msra.mxu0 0
    %321 = vmatprep.subr.bf16.mxu0 0
    %322 = vmatpush2.bf16.msra.mxu0 0
    %323 = vmatprep.subr.bf16.mxu0 0
    %324 = vmatpush2.bf16.msra.mxu0 0
    %325 = vmatprep.subr.bf16.mxu0 0
    %326 = vmatpush2.bf16.msra.mxu0 0
    %327 = vmatprep.subr.bf16.mxu0 0
    %328 = vmatpush2.bf16.msra.mxu0 0
    %329 = vmatprep.subr.bf16.mxu0 0
    %330 = vmatpush2.bf16.msra.mxu0 0
    %331 = vmatprep.mubr.bf16.mxu0 0
    %332 = vmatmul.mubr.bf16.gmra.mxu0 %v227
    %v333 = vpop.f32.mrf.mxu0
    %v334 = vadd.f32 %v249, %v333
    %v335 = vpop.f32.mrf.mxu0
    %v336 = vpop.f32.mrf.mxu0
    %v337 = vadd.f32 %v249, %v336
    %v338 = vpop.f32.mrf.mxu0
    %339 = vdwg.mxu0
    %v340 = vpack.c.bf16 %v337, %v334
    %v341 = vld [vmem:[#allocation6] sm:$0xf]
    %v342 = vld [vmem:[#allocation6 + $0x4] sm:$0xf]
    %v343 = vld [vmem:[#allocation6 + $0x8] sm:$0xf]
    %v344 = vld [vmem:[#allocation6 + $0xc] sm:$0xf]
    %v345 = vld [vmem:[#allocation6 + $0x10] sm:$0xf]
    %v346 = vld [vmem:[#allocation6 + $0x14] sm:$0xf]
    %v347 = vld [vmem:[#allocation6 + $0x18] sm:$0xf]
    %v348 = vld [vmem:[#allocation6 + $0x1c] sm:$0xf]
    %v349 = vld [vmem:[#allocation6 + $0x20] sm:$0xf]
    %v350 = vld [vmem:[#allocation6 + $0x24] sm:$0xf]
    %v351 = vld [vmem:[#allocation6 + $0x28] sm:$0xf]
    %v352 = vld [vmem:[#allocation6 + $0x2c] sm:$0xf]
    %v353 = vld [vmem:[#allocation6 + $0x30] sm:$0xf]
    %v354 = vld [vmem:[#allocation6 + $0x34] sm:$0xf]
    %v355 = vld [vmem:[#allocation6 + $0x38] sm:$0xf]
    %v356 = vld [vmem:[#allocation6 + $0x3c] sm:$0xf]
    %v357 = vld [vmem:[%s6] sm:$0x1]
    %v359 = vlaneseq
    %v360 = vshrl.u32 %v359, 7
    %v361 = vsub.s32 0, %v360
    %v362 = vrot.slane %v357, %v361
    %v380 = vunpack.c.l.b16 %v341
    %v381 = vunpack.c.l.b16 %v342
    %v382 = vunpack.c.l.b16 %v343
    %v383 = vunpack.c.l.b16 %v344
    %v384 = vunpack.c.l.b16 %v345
    %v385 = vunpack.c.l.b16 %v346
    %v386 = vunpack.c.l.b16 %v347
    %v387 = vunpack.c.l.b16 %v348
    %v388 = vunpack.c.l.b16 %v349
    %v389 = vunpack.c.l.b16 %v350
    %v390 = vunpack.c.l.b16 %v351
    %v391 = vunpack.c.l.b16 %v352
    %v392 = vunpack.c.l.b16 %v353
    %v393 = vunpack.c.l.b16 %v354
    %v394 = vunpack.c.l.b16 %v355
    %v395 = vunpack.c.l.b16 %v356
    %v396 = vpack.c.b16 %v381, %v380
    %v397 = vpack.c.b16 %v383, %v382
    %v398 = vpack.c.b16 %v385, %v384
    %v399 = vpack.c.b16 %v387, %v386
    %v400 = vpack.c.b16 %v389, %v388
    %v401 = vpack.c.b16 %v391, %v390
    %v402 = vpack.c.b16 %v393, %v392
    %v403 = vpack.c.b16 %v395, %v394
    %412 = vmatprep.subr.bf16.mxu0 0
    %413 = vmatpush1.bf16.msra.mxu0 %v403
    %414 = vmatprep.subr.bf16.mxu0 0
    %415 = vmatpush1.bf16.msra.mxu0 %v402
    %416 = vmatprep.subr.bf16.mxu0 0
    %417 = vmatpush1.bf16.msra.mxu0 %v401
    %418 = vmatprep.subr.bf16.mxu0 0
    %419 = vmatpush1.bf16.msra.mxu0 %v400
    %420 = vmatprep.subr.bf16.mxu0 0
    %421 = vmatpush1.bf16.msra.mxu0 %v399
    %422 = vmatprep.subr.bf16.mxu0 0
    %423 = vmatpush1.bf16.msra.mxu0 %v398
    %424 = vmatprep.subr.bf16.mxu0 0
    %425 = vmatpush1.bf16.msra.mxu0 %v397
    %426 = vmatprep.subr.bf16.mxu0 0
    %427 = vmatpush1.bf16.msra.mxu0 %v396
    %428 = vmatprep.subr.bf16.mxu0 0
    %429 = vmatpush2.bf16.msra.mxu0 0
    %430 = vmatprep.subr.bf16.mxu0 0
    %431 = vmatpush2.bf16.msra.mxu0 0
    %432 = vmatprep.subr.bf16.mxu0 0
    %433 = vmatpush2.bf16.msra.mxu0 0
    %434 = vmatprep.subr.bf16.mxu0 0
    %435 = vmatpush2.bf16.msra.mxu0 0
    %436 = vmatprep.subr.bf16.mxu0 0
    %437 = vmatpush2.bf16.msra.mxu0 0
    %438 = vmatprep.subr.bf16.mxu0 0
    %439 = vmatpush2.bf16.msra.mxu0 0
    %440 = vmatprep.subr.bf16.mxu0 0
    %441 = vmatpush2.bf16.msra.mxu0 0
    %442 = vmatprep.subr.bf16.mxu0 0
    %443 = vmatpush2.bf16.msra.mxu0 0
    %444 = vmatprep.mubr.bf16.mxu0 0
    %445 = vmatmul.mubr.bf16.gmra.mxu0 %v340
    %v446 = vpop.f32.mrf.mxu0
    %v447 = vadd.f32 %v362, %v446
    %v448 = vpop.f32.mrf.mxu0
    %v449 = vpop.f32.mrf.mxu0
    %v450 = vadd.f32 %v362, %v449
    %v451 = vpop.f32.mrf.mxu0
    %452 = vdwg.mxu0
    %v453 = vpack.c.bf16 %v450, %v447
    %v454 = vld [vmem:[#allocation7] sm:$0xf]
    %v455 = vld [vmem:[#allocation7 + $0x4] sm:$0xf]
    %v456 = vld [vmem:[#allocation7 + $0x8] sm:$0xf]
    %v457 = vld [vmem:[#allocation7 + $0xc] sm:$0xf]
    %v458 = vld [vmem:[#allocation7 + $0x10] sm:$0xf]
    %v459 = vld [vmem:[#allocation7 + $0x14] sm:$0xf]
    %v460 = vld [vmem:[#allocation7 + $0x18] sm:$0xf]
    %v461 = vld [vmem:[#allocation7 + $0x1c] sm:$0xf]
    %v462 = vld [vmem:[#allocation7 + $0x20] sm:$0xf]
    %v463 = vld [vmem:[#allocation7 + $0x24] sm:$0xf]
    %v464 = vld [vmem:[#allocation7 + $0x28] sm:$0xf]
    %v465 = vld [vmem:[#allocation7 + $0x2c] sm:$0xf]
    %v466 = vld [vmem:[#allocation7 + $0x30] sm:$0xf]
    %v467 = vld [vmem:[#allocation7 + $0x34] sm:$0xf]
    %v468 = vld [vmem:[#allocation7 + $0x38] sm:$0xf]
    %v469 = vld [vmem:[#allocation7 + $0x3c] sm:$0xf]
    %v470 = vld [vmem:[%s8] sm:$0x1]
    %v472 = vlaneseq
    %v473 = vshrl.u32 %v472, 7
    %v474 = vsub.s32 0, %v473
    %v475 = vrot.slane %v470, %v474
    %v493 = vunpack.c.l.b16 %v454
    %v494 = vunpack.c.l.b16 %v455
    %v495 = vunpack.c.l.b16 %v456
    %v496 = vunpack.c.l.b16 %v457
    %v497 = vunpack.c.l.b16 %v458
    %v498 = vunpack.c.l.b16 %v459
    %v499 = vunpack.c.l.b16 %v460
    %v500 = vunpack.c.l.b16 %v461
    %v501 = vunpack.c.l.b16 %v462
    %v502 = vunpack.c.l.b16 %v463
    %v503 = vunpack.c.l.b16 %v464
    %v504 = vunpack.c.l.b16 %v465
    %v505 = vunpack.c.l.b16 %v466
    %v506 = vunpack.c.l.b16 %v467
    %v507 = vunpack.c.l.b16 %v468
    %v508 = vunpack.c.l.b16 %v469
    %v509 = vpack.c.b16 %v494, %v493
    %v510 = vpack.c.b16 %v496, %v495
    %v511 = vpack.c.b16 %v498, %v497
    %v512 = vpack.c.b16 %v500, %v499
    %v513 = vpack.c.b16 %v502, %v501
    %v514 = vpack.c.b16 %v504, %v503
    %v515 = vpack.c.b16 %v506, %v505
    %v516 = vpack.c.b16 %v508, %v507
    %525 = vmatprep.subr.bf16.mxu0 0
    %526 = vmatpush1.bf16.msra.mxu0 %v516
    %527 = vmatprep.subr.bf16.mxu0 0
    %528 = vmatpush1.bf16.msra.mxu0 %v515
    %529 = vmatprep.subr.bf16.mxu0 0
    %530 = vmatpush1.bf16.msra.mxu0 %v514
    %531 = vmatprep.subr.bf16.mxu0 0
    %532 = vmatpush1.bf16.msra.mxu0 %v513
    %533 = vmatprep.subr.bf16.mxu0 0
    %534 = vmatpush1.bf16.msra.mxu0 %v512
    %535 = vmatprep.subr.bf16.mxu0 0
    %536 = vmatpush1.bf16.msra.mxu0 %v511
    %537 = vmatprep.subr.bf16.mxu0 0
    %538 = vmatpush1.bf16.msra.mxu0 %v510
    %539 = vmatprep.subr.bf16.mxu0 0
    %540 = vmatpush1.bf16.msra.mxu0 %v509
    %541 = vmatprep.subr.bf16.mxu0 0
    %542 = vmatpush2.bf16.msra.mxu0 0
    %543 = vmatprep.subr.bf16.mxu0 0
    %544 = vmatpush2.bf16.msra.mxu0 0
    %545 = vmatprep.subr.bf16.mxu0 0
    %546 = vmatpush2.bf16.msra.mxu0 0
    %547 = vmatprep.subr.bf16.mxu0 0
    %548 = vmatpush2.bf16.msra.mxu0 0
    %549 = vmatprep.subr.bf16.mxu0 0
    %550 = vmatpush2.bf16.msra.mxu0 0
    %551 = vmatprep.subr.bf16.mxu0 0
    %552 = vmatpush2.bf16.msra.mxu0 0
    %553 = vmatprep.subr.bf16.mxu0 0
    %554 = vmatpush2.bf16.msra.mxu0 0
    %555 = vmatprep.subr.bf16.mxu0 0
    %556 = vmatpush2.bf16.msra.mxu0 0
    %557 = vmatprep.mubr.bf16.mxu0 0
    %558 = vmatmul.mubr.bf16.gmra.mxu0 %v453
    %v559 = vpop.f32.mrf.mxu0
    %v560 = vadd.f32 %v475, %v559
    %v561 = vpop.f32.mrf.mxu0
    %v562 = vpop.f32.mrf.mxu0
    %v563 = vadd.f32 %v475, %v562
    %v564 = vpop.f32.mrf.mxu0
    %565 = vdwg.mxu0
    %v566 = vpack.c.bf16 %v563, %v560
    %v567 = vld [vmem:[#allocation9] sm:$0xf]
    %v568 = vld [vmem:[#allocation9 + $0x4] sm:$0xf]
    %v569 = vld [vmem:[#allocation9 + $0x8] sm:$0xf]
    %v570 = vld [vmem:[#allocation9 + $0xc] sm:$0xf]
    %v571 = vld [vmem:[#allocation9 + $0x10] sm:$0xf]
    %v572 = vld [vmem:[#allocation9 + $0x14] sm:$0xf]
    %v573 = vld [vmem:[#allocation9 + $0x18] sm:$0xf]
    %v574 = vld [vmem:[#allocation9 + $0x1c] sm:$0xf]
    %v575 = vld [vmem:[#allocation9 + $0x20] sm:$0xf]
    %v576 = vld [vmem:[#allocation9 + $0x24] sm:$0xf]
    %v577 = vld [vmem:[#allocation9 + $0x28] sm:$0xf]
    %v578 = vld [vmem:[#allocation9 + $0x2c] sm:$0xf]
    %v579 = vld [vmem:[#allocation9 + $0x30] sm:$0xf]
    %v580 = vld [vmem:[#allocation9 + $0x34] sm:$0xf]
    %v581 = vld [vmem:[#allocation9 + $0x38] sm:$0xf]
    %v582 = vld [vmem:[#allocation9 + $0x3c] sm:$0xf]
    %v583 = vld [vmem:[%s10] sm:$0x1]
    %v585 = vlaneseq
    %v586 = vshrl.u32 %v585, 7
    %v587 = vsub.s32 0, %v586
    %v588 = vrot.slane %v583, %v587
    %v606 = vunpack.c.l.b16 %v567
    %v607 = vunpack.c.l.b16 %v568
    %v608 = vunpack.c.l.b16 %v569
    %v609 = vunpack.c.l.b16 %v570
    %v610 = vunpack.c.l.b16 %v571
    %v611 = vunpack.c.l.b16 %v572
    %v612 = vunpack.c.l.b16 %v573
    %v613 = vunpack.c.l.b16 %v574
    %v614 = vunpack.c.l.b16 %v575
    %v615 = vunpack.c.l.b16 %v576
    %v616 = vunpack.c.l.b16 %v577
    %v617 = vunpack.c.l.b16 %v578
    %v618 = vunpack.c.l.b16 %v579
    %v619 = vunpack.c.l.b16 %v580
    %v620 = vunpack.c.l.b16 %v581
    %v621 = vunpack.c.l.b16 %v582
    %v622 = vpack.c.b16 %v607, %v606
    %v623 = vpack.c.b16 %v609, %v608
    %v624 = vpack.c.b16 %v611, %v610
    %v625 = vpack.c.b16 %v613, %v612
    %v626 = vpack.c.b16 %v615, %v614
    %v627 = vpack.c.b16 %v617, %v616
    %v628 = vpack.c.b16 %v619, %v618
    %v629 = vpack.c.b16 %v621, %v620
    %638 = vmatprep.subr.bf16.mxu0 0
    %639 = vmatpush1.bf16.msra.mxu0 %v629
    %640 = vmatprep.subr.bf16.mxu0 0
    %641 = vmatpush1.bf16.msra.mxu0 %v628
    %642 = vmatprep.subr.bf16.mxu0 0
    %643 = vmatpush1.bf16.msra.mxu0 %v627
    %644 = vmatprep.subr.bf16.mxu0 0
    %645 = vmatpush1.bf16.msra.mxu0 %v626
    %646 = vmatprep.subr.bf16.mxu0 0
    %647 = vmatpush1.bf16.msra.mxu0 %v625
    %648 = vmatprep.subr.bf16.mxu0 0
    %649 = vmatpush1.bf16.msra.mxu0 %v624
    %650 = vmatprep.subr.bf16.mxu0 0
    %651 = vmatpush1.bf16.msra.mxu0 %v623
    %652 = vmatprep.subr.bf16.mxu0 0
    %653 = vmatpush1.bf16.msra.mxu0 %v622
    %654 = vmatprep.subr.bf16.mxu0 0
    %655 = vmatpush2.bf16.msra.mxu0 0
    %656 = vmatprep.subr.bf16.mxu0 0
    %657 = vmatpush2.bf16.msra.mxu0 0
    %658 = vmatprep.subr.bf16.mxu0 0
    %659 = vmatpush2.bf16.msra.mxu0 0
    %660 = vmatprep.subr.bf16.mxu0 0
    %661 = vmatpush2.bf16.msra.mxu0 0
    %662 = vmatprep.subr.bf16.mxu0 0
    %663 = vmatpush2.bf16.msra.mxu0 0
    %664 = vmatprep.subr.bf16.mxu0 0
    %665 = vmatpush2.bf16.msra.mxu0 0
    %666 = vmatprep.subr.bf16.mxu0 0
    %667 = vmatpush2.bf16.msra.mxu0 0
    %668 = vmatprep.subr.bf16.mxu0 0
    %669 = vmatpush2.bf16.msra.mxu0 0
    %670 = vmatprep.mubr.bf16.mxu0 0
    %671 = vmatmul.mubr.bf16.gmra.mxu0 %v566
    %v672 = vpop.f32.mrf.mxu0
    %v673 = vadd.f32 %v588, %v672
    %v674 = vpop.f32.mrf.mxu0
    %v675 = vpop.f32.mrf.mxu0
    %v676 = vadd.f32 %v588, %v675
    %v677 = vpop.f32.mrf.mxu0
    %678 = vdwg.mxu0
    %679 = vst [vmem:[%s11] sm:$0xff] %v673
    %680 = vst [vmem:[%s11 + $0x8] sm:$0xff] %v676
    // Predicated region
    $region66: #{fc_block.1} parent=1 // pred_check
      _
    $region67: #{fc_block.1} parent=1 // pred_check_branch
      %682 = sbr.rel (0) target = $region69
    $region68: #{fc_block.1} parent=1 // pred_region
      _
    $region69: #{fc_block.1} parent=1 // pred_fallthru
      _
    // Predicated region
    $region70: #{fc_block.1} parent=1 // pred_check
      _
    $region71: #{fc_block.1} parent=1 // pred_check_branch
      %684 = sbr.rel (0) target = $region73
    $region72: #{fc_block.1} parent=1 // pred_region
      _
    $region73: #{fc_block.1} parent=1 // pred_fallthru
      _
    %685 = vsyncpa [#allocation3], 1
    %686 = vsyncpa [#allocation5], 1
    %687 = vsyncpa [#allocation8], 1

</llo_original>
